<compile_context>
chip_gen: v7x
topology: tpu7x:2x2x1
jax: 0.10.0
libtpu: 0.0.40
codegen_flags: <defaults>
</compile_context>

<pallas_src>
import functools

import jax
import jax.numpy as jnp
from jax import lax
from jax.experimental import pallas as pl
from jax.experimental.pallas import tpu as pltpu


def _layer_norm(x, gamma, beta, eps):
    # x: [TM, d_model] f32; gamma/beta: [1, d_model] f32
    mean = jnp.mean(x, axis=-1, keepdims=True)
    var = jnp.mean(jnp.square(x - mean), axis=-1, keepdims=True)
    inv = lax.rsqrt(var + eps)
    return (x - mean) * inv * gamma + beta


def _pwff_kernel(x_ref, w1_ref, b1_ref, w2_ref, b2_ref, g_ref, be_ref, out_ref,
                 *, pre_lnorm, eps):
    # x_ref:  [TM, d_model]
    # w1_ref: [d_model, d_inner]   b1_ref: [1, d_inner]
    # w2_ref: [d_inner, d_model]   b2_ref: [1, d_model]
    # g_ref/be_ref: [1, d_model]
    # out_ref: [TM, d_model]
    x = x_ref[...].astype(jnp.float32)
    gamma = g_ref[...].astype(jnp.float32)
    beta = be_ref[...].astype(jnp.float32)

    def core_net(z):
        h = jnp.dot(z, w1_ref[...].astype(jnp.float32),
                    preferred_element_type=jnp.float32)
        h = h + b1_ref[...].astype(jnp.float32)
        h = jnp.maximum(h, 0.0)                      # ReLU
        y = jnp.dot(h, w2_ref[...].astype(jnp.float32),
                    preferred_element_type=jnp.float32)
        return y + b2_ref[...].astype(jnp.float32)

    if pre_lnorm:
        out = x + core_net(_layer_norm(x, gamma, beta, eps))
    else:
        out = _layer_norm(x + core_net(x), gamma, beta, eps)

    out_ref[...] = out.astype(out_ref.dtype)


def _round_up(n, m):
    return ((n + m - 1) // m) * m


def positionwise_ff(inp, w1, b1, w2, b2, gamma, beta, *,
                    pre_lnorm=False, eps=1e-5, block_rows=256):
    """inp: [..., d_model]; w1: [d_model, d_inner]; w2: [d_inner, d_model].
    Returns an array with the same shape and dtype as `inp`."""
    orig_shape = inp.shape
    d_model = orig_shape[-1]
    d_inner = w1.shape[1]

    x2d = inp.reshape(-1, d_model)
    n_rows = x2d.shape[0]

    # Row tile: multiple of 8 sublanes; cap at block_rows for VMEM friendliness.
    tm = min(block_rows, _round_up(n_rows, 8))
    n_pad = _round_up(n_rows, tm)
    if n_pad != n_rows:
        # Padded rows are independent garbage rows (LayerNorm is per-row); they
        # are sliced off below, so zero-padding is safe.
        x2d = jnp.pad(x2d, ((0, n_pad - n_rows), (0, 0)))

    b1_2d = b1.reshape(1, d_inner)
    b2_2d = b2.reshape(1, d_model)
    g_2d = gamma.reshape(1, d_model)
    be_2d = beta.reshape(1, d_model)

    kernel = functools.partial(_pwff_kernel, pre_lnorm=pre_lnorm, eps=eps)

    out2d = pl.pallas_call(
        kernel,
        out_shape=jax.ShapeDtypeStruct((n_pad, d_model), inp.dtype),
        grid=(n_pad // tm,),
        in_specs=[
            pl.BlockSpec((tm, d_model), lambda i: (i, 0)),        # x tile
            pl.BlockSpec((d_model, d_inner), lambda i: (0, 0)),   # W1 (resident)
            pl.BlockSpec((1, d_inner), lambda i: (0, 0)),         # b1
            pl.BlockSpec((d_inner, d_model), lambda i: (0, 0)),   # W2 (resident)
            pl.BlockSpec((1, d_model), lambda i: (0, 0)),         # b2
            pl.BlockSpec((1, d_model), lambda i: (0, 0)),         # gamma
            pl.BlockSpec((1, d_model), lambda i: (0, 0)),         # beta
        ],
        out_specs=pl.BlockSpec((tm, d_model), lambda i: (i, 0)),
        compiler_params=pltpu.CompilerParams(
            dimension_semantics=("parallel",),
        ),
    )(x2d, w1, b1_2d, w2, b2_2d, g_2d, be_2d)

    return out2d[:n_rows].reshape(orig_shape)


def _reference(inp, w1, b1, w2, b2, gamma, beta, *, pre_lnorm, eps=1e-5):
    def ln(x):
        mean = jnp.mean(x, axis=-1, keepdims=True)
        var = jnp.mean(jnp.square(x - mean), axis=-1, keepdims=True)
        return (x - mean) / jnp.sqrt(var + eps) * gamma + beta

    def core(z):
        h = jnp.maximum(z @ w1 + b1, 0.0)
        return h @ w2 + b2

    if pre_lnorm:
        return inp + core(ln(inp))
    return ln(inp + core(inp))


if __name__ == "__main__":
    key = jax.random.PRNGKey(0)
    k1, k2, k3, k4, k5, k6 = jax.random.split(key, 6)

    # Small module-consistent shapes: seq=8, batch=2, d_model=32, d_inner=64.
    seq, bsz, d_model, d_inner = 8, 2, 32, 64

    inp = jax.random.normal(k1, (seq, bsz, d_model), dtype=jnp.float32)
    w1 = jax.random.normal(k2, (d_model, d_inner), dtype=jnp.float32) * 0.1
    b1 = jax.random.normal(k3, (d_inner,), dtype=jnp.float32) * 0.1
    w2 = jax.random.normal(k4, (d_inner, d_model), dtype=jnp.float32) * 0.1
    b2 = jax.random.normal(k5, (d_model,), dtype=jnp.float32) * 0.1
    gamma = 1.0 + 0.1 * jax.random.normal(k6, (d_model,), dtype=jnp.float32)
    beta = 0.05 * jnp.ones((d_model,), dtype=jnp.float32)

    ok = True
    for pre_lnorm in (False, True):
        out = positionwise_ff(inp, w1, b1, w2, b2, gamma, beta,
                              pre_lnorm=pre_lnorm, eps=1e-5)
        out = jax.block_until_ready(out)
        ref = _reference(inp, w1, b1, w2, b2, gamma, beta,
                         pre_lnorm=pre_lnorm, eps=1e-5)
        assert out.shape == (seq, bsz, d_model), out.shape
        if not jnp.allclose(out, ref, atol=1e-4, rtol=1e-4):
            ok = False
            print(f"mismatch (pre_lnorm={pre_lnorm}): "
                  f"max abs err = {jnp.max(jnp.abs(out - ref))}")

    assert ok, "mismatch vs reference"
    print("KERNEL_OK")
</pallas_src>

<mosaic_0001>
module attributes {stable_mosaic.version = 11 : i64} {
  func.func @_pwff_kernel(%arg0: i32, %arg1: memref<16x32xf32, #tpu.memory_space<vmem>>, %arg2: memref<32x64xf32, #tpu.memory_space<vmem>>, %arg3: memref<1x64xf32, #tpu.memory_space<vmem>>, %arg4: memref<64x32xf32, #tpu.memory_space<vmem>>, %arg5: memref<1x32xf32, #tpu.memory_space<vmem>>, %arg6: memref<1x32xf32, #tpu.memory_space<vmem>>, %arg7: memref<1x32xf32, #tpu.memory_space<vmem>>, %arg8: memref<16x32xf32, #tpu.memory_space<vmem>>) attributes {dimension_semantics = [#tpu.dimension_semantics<parallel>], iteration_bounds = array<i64: 1>, scalar_prefetch = 0 : i64, scratch_operands = 0 : i64, tpu.core_type = #tpu.core_type<tc>, window_params = [{transform_indices = @transform_0, window_bounds = array<i64: 16, 32>}, {pipeline_mode = #tpu.pipeline_mode<synchronous>, transform_indices = @transform_1, window_bounds = array<i64: 32, 64>}, {pipeline_mode = #tpu.pipeline_mode<synchronous>, transform_indices = @transform_2, window_bounds = array<i64: 1, 64>}, {pipeline_mode = #tpu.pipeline_mode<synchronous>, transform_indices = @transform_3, window_bounds = array<i64: 64, 32>}, {pipeline_mode = #tpu.pipeline_mode<synchronous>, transform_indices = @transform_4, window_bounds = array<i64: 1, 32>}, {pipeline_mode = #tpu.pipeline_mode<synchronous>, transform_indices = @transform_5, window_bounds = array<i64: 1, 32>}, {pipeline_mode = #tpu.pipeline_mode<synchronous>, transform_indices = @transform_6, window_bounds = array<i64: 1, 32>}, {transform_indices = @transform_7, window_bounds = array<i64: 16, 32>}]} {
    %c0 = arith.constant 0 : index
    %c0_0 = arith.constant 0 : index
    %0 = vector.load %arg1[%c0, %c0_0] : memref<16x32xf32, #tpu.memory_space<vmem>>, vector<16x32xf32>
    %c0_1 = arith.constant 0 : index
    %c0_2 = arith.constant 0 : index
    %1 = vector.load %arg6[%c0_1, %c0_2] : memref<1x32xf32, #tpu.memory_space<vmem>>, vector<1x32xf32>
    %c0_3 = arith.constant 0 : index
    %c0_4 = arith.constant 0 : index
    %2 = vector.load %arg7[%c0_3, %c0_4] : memref<1x32xf32, #tpu.memory_space<vmem>>, vector<1x32xf32>
    %c0_5 = arith.constant 0 : index
    %c0_6 = arith.constant 0 : index
    %3 = vector.load %arg2[%c0_5, %c0_6] : memref<32x64xf32, #tpu.memory_space<vmem>>, vector<32x64xf32>
    %cst = arith.constant dense<0.000000e+00> : vector<16x64xf32>
    %4 = tpu.matmul %0, %3, %cst {dimension_numbers = #tpu.dot_dimension_numbers<[1], [0], [0], [1], [0, 0, 1, 1], [], []>} : vector<16x32xf32>, vector<32x64xf32>, vector<16x64xf32> -> vector<16x64xf32>
    %c0_7 = arith.constant 0 : index
    %c0_8 = arith.constant 0 : index
    %5 = vector.load %arg3[%c0_7, %c0_8] : memref<1x64xf32, #tpu.memory_space<vmem>>, vector<1x64xf32>
    %6 = vector.broadcast %5 : vector<1x64xf32> to vector<16x64xf32>
    %7 = arith.addf %4, %6 : vector<16x64xf32>
    %cst_9 = arith.constant 0.000000e+00 : f32
    %8 = vector.broadcast %cst_9 : f32 to vector<16x64xf32>
    %9 = arith.maximumf %7, %8 : vector<16x64xf32>
    %c0_10 = arith.constant 0 : index
    %c0_11 = arith.constant 0 : index
    %10 = vector.load %arg4[%c0_10, %c0_11] : memref<64x32xf32, #tpu.memory_space<vmem>>, vector<64x32xf32>
    %cst_12 = arith.constant dense<0.000000e+00> : vector<16x32xf32>
    %11 = tpu.matmul %9, %10, %cst_12 {dimension_numbers = #tpu.dot_dimension_numbers<[1], [0], [0], [1], [0, 0, 1, 1], [], []>} : vector<16x64xf32>, vector<64x32xf32>, vector<16x32xf32> -> vector<16x32xf32>
    %c0_13 = arith.constant 0 : index
    %c0_14 = arith.constant 0 : index
    %12 = vector.load %arg5[%c0_13, %c0_14] : memref<1x32xf32, #tpu.memory_space<vmem>>, vector<1x32xf32>
    %13 = vector.broadcast %12 : vector<1x32xf32> to vector<16x32xf32>
    %14 = arith.addf %11, %13 : vector<16x32xf32>
    %15 = arith.addf %0, %14 : vector<16x32xf32>
    %cst_15 = arith.constant dense<0.000000e+00> : vector<16xf32>
    %16 = vector.multi_reduction <add>, %15, %cst_15 [1] : vector<16x32xf32> to vector<16xf32>
    %17 = vector.shape_cast %16 : vector<16xf32> to vector<16x1xf32>
    %cst_16 = arith.constant 3.200000e+01 : f32
    %18 = vector.broadcast %cst_16 : f32 to vector<16x1xf32>
    %19 = arith.divf %17, %18 : vector<16x1xf32>
    %20 = vector.broadcast %19 : vector<16x1xf32> to vector<16x32xf32>
    %21 = arith.subf %15, %20 : vector<16x32xf32>
    %22 = arith.mulf %21, %21 : vector<16x32xf32>
    %cst_17 = arith.constant dense<0.000000e+00> : vector<16xf32>
    %23 = vector.multi_reduction <add>, %22, %cst_17 [1] : vector<16x32xf32> to vector<16xf32>
    %24 = vector.shape_cast %23 : vector<16xf32> to vector<16x1xf32>
    %cst_18 = arith.constant 3.200000e+01 : f32
    %25 = vector.broadcast %cst_18 : f32 to vector<16x1xf32>
    %26 = arith.divf %24, %25 : vector<16x1xf32>
    %cst_19 = arith.constant 9.99999974E-6 : f32
    %27 = vector.broadcast %cst_19 : f32 to vector<16x1xf32>
    %28 = arith.addf %26, %27 : vector<16x1xf32>
    %29 = math.rsqrt %28 : vector<16x1xf32>
    %30 = vector.broadcast %19 : vector<16x1xf32> to vector<16x32xf32>
    %31 = arith.subf %15, %30 : vector<16x32xf32>
    %32 = vector.broadcast %29 : vector<16x1xf32> to vector<16x32xf32>
    %33 = arith.mulf %31, %32 : vector<16x32xf32>
    %34 = vector.broadcast %1 : vector<1x32xf32> to vector<16x32xf32>
    %35 = arith.mulf %33, %34 : vector<16x32xf32>
    %36 = vector.broadcast %2 : vector<1x32xf32> to vector<16x32xf32>
    %37 = arith.addf %35, %36 : vector<16x32xf32>
    %c0_20 = arith.constant 0 : index
    %c0_21 = arith.constant 0 : index
    %38 = vector.load %arg8[%c0_20, %c0_21] : memref<16x32xf32, #tpu.memory_space<vmem>>, vector<16x32xf32>
    tpu.vector_store %arg8[%c0_20, %c0_21], %37 {strides = array<i32>} : memref<16x32xf32, #tpu.memory_space<vmem>>, vector<16x32xf32>,
    return
  }
  func.func @transform_0(%arg0: i32) -> (i32, i32) {
    %c0_i32 = arith.constant 0 : i32
    %c0_i32_0 = arith.constant 0 : i32
    return %arg0, %c0_i32 : i32, i32
  }
  func.func @transform_1(%arg0: i32) -> (i32, i32) {
    %c0_i32 = arith.constant 0 : i32
    %c0_i32_0 = arith.constant 0 : i32
    %c0_i32_1 = arith.constant 0 : i32
    return %c0_i32, %c0_i32_0 : i32, i32
  }
  func.func @transform_2(%arg0: i32) -> (i32, i32) {
    %c0_i32 = arith.constant 0 : i32
    %c0_i32_0 = arith.constant 0 : i32
    %c0_i32_1 = arith.constant 0 : i32
    return %c0_i32, %c0_i32_0 : i32, i32
  }
  func.func @transform_3(%arg0: i32) -> (i32, i32) {
    %c0_i32 = arith.constant 0 : i32
    %c0_i32_0 = arith.constant 0 : i32
    %c0_i32_1 = arith.constant 0 : i32
    return %c0_i32, %c0_i32_0 : i32, i32
  }
  func.func @transform_4(%arg0: i32) -> (i32, i32) {
    %c0_i32 = arith.constant 0 : i32
    %c0_i32_0 = arith.constant 0 : i32
    %c0_i32_1 = arith.constant 0 : i32
    return %c0_i32, %c0_i32_0 : i32, i32
  }
  func.func @transform_5(%arg0: i32) -> (i32, i32) {
    %c0_i32 = arith.constant 0 : i32
    %c0_i32_0 = arith.constant 0 : i32
    %c0_i32_1 = arith.constant 0 : i32
    return %c0_i32, %c0_i32_0 : i32, i32
  }
  func.func @transform_6(%arg0: i32) -> (i32, i32) {
    %c0_i32 = arith.constant 0 : i32
    %c0_i32_0 = arith.constant 0 : i32
    %c0_i32_1 = arith.constant 0 : i32
    return %c0_i32, %c0_i32_0 : i32, i32
  }
  func.func @transform_7(%arg0: i32) -> (i32, i32) {
    %c0_i32 = arith.constant 0 : i32
    %c0_i32_0 = arith.constant 0 : i32
    return %arg0, %c0_i32 : i32, i32
  }
}

</mosaic_0001>

<llo_original>
// kernel: tpu_custom_call.1
$region0: #{tpu_custom_call.1}
  #allocation0 [shape = 'u32[]', space=smem, size = 0x4, offset = 0x4, fixed_abs, tag = 'smem constant byte address 0x4 - core index']
  #allocation1 [shape = 'u32[144,128]{1,0:T(1,128)}', space=vmem, size = 0x12000, scoped, tag = 'internal scratch']
  %s0 = inlined_call_operand.vmem [shape: f32[16,32], index: 0, kind: input, shape index: {}]
  %s1 = inlined_call_operand.vmem [shape: f32[32,64], index: 1, kind: input, shape index: {}]
  %s2 = inlined_call_operand.vmem [shape: f32[1,64], index: 2, kind: input, shape index: {}]
  %s3 = inlined_call_operand.vmem [shape: f32[64,32], index: 3, kind: input, shape index: {}]
  %s4 = inlined_call_operand.vmem [shape: f32[1,32], index: 4, kind: input, shape index: {}]
  %s5 = inlined_call_operand.vmem [shape: f32[1,32], index: 5, kind: input, shape index: {}]
  %s6 = inlined_call_operand.vmem [shape: f32[1,32], index: 6, kind: input, shape index: {}]
  %s7 = inlined_call_operand.hbm [shape: f32[16,32], index: 7, kind: output, shape index: {}]
  %s8 = sld [smem:[#allocation0]]
  $region38: #{tpu_custom_call.1} parent=0
    _
  %s10 = ssub.s32 1, %s8
  %s11 = scalar_select 0, %s10, %s8
  $region1: #{tpu_custom_call.1} parent=0
    #allocation2 [shape = 'u8[8192]{0}', space=vmem, size = 0x2000, scoped, tag = 'output window, operand 0, single buffered']
    #allocation3 [shape = 's32[1]{0}', space=sflag, size = 0x4, scoped, tag = 'scoped memory for tpu_custom_call.1']
    %12 = vsyncpa [#allocation3], 0
    // Predicated region
    $region2: #{tpu_custom_call.1} parent=1 // pred_check
      _
    $region3: #{tpu_custom_call.1} parent=1 // pred_check_branch
      %14 = sbr.rel (0) target = $region5
    $region4: #{tpu_custom_call.1} parent=1 // pred_region
      _
    $region5: #{tpu_custom_call.1} parent=1 // pred_fallthru
      _
    // Predicated region
    $region6: #{tpu_custom_call.1} parent=1 // pred_check
      _
    $region7: #{tpu_custom_call.1} parent=1 // pred_check_branch
      %16 = sbr.rel (0) target = $region9
    $region8: #{tpu_custom_call.1} parent=1 // pred_region
      _
    $region9: #{tpu_custom_call.1} parent=1 // pred_fallthru
      _
    // Predicated region
    $region10: #{tpu_custom_call.1} parent=1 // pred_check
      _
    $region11: #{tpu_custom_call.1} parent=1 // pred_check_branch
      %18 = sbr.rel (0) target = $region13
    $region12: #{tpu_custom_call.1} parent=1 // pred_region
      _
    $region13: #{tpu_custom_call.1} parent=1 // pred_fallthru
      _
    // Predicated region
    $region14: #{tpu_custom_call.1} parent=1 // pred_check
      _
    $region15: #{tpu_custom_call.1} parent=1 // pred_check_branch
      %20 = sbr.rel (0) target = $region17
    $region16: #{tpu_custom_call.1} parent=1 // pred_region
      _
    $region17: #{tpu_custom_call.1} parent=1 // pred_fallthru
      _
    // Predicated region
    $region18: #{tpu_custom_call.1} parent=1 // pred_check
      _
    $region19: #{tpu_custom_call.1} parent=1 // pred_check_branch
      %22 = sbr.rel (0) target = $region21
    $region20: #{tpu_custom_call.1} parent=1 // pred_region
      _
    $region21: #{tpu_custom_call.1} parent=1 // pred_fallthru
      _
    // Predicated region
    $region22: #{tpu_custom_call.1} parent=1 // pred_check
      _
    $region23: #{tpu_custom_call.1} parent=1 // pred_check_branch
      %24 = sbr.rel (0) target = $region25
    $region24: #{tpu_custom_call.1} parent=1 // pred_region
      _
    $region25: #{tpu_custom_call.1} parent=1 // pred_fallthru
      _
    // Predicated region
    $region26: #{tpu_custom_call.1} parent=1 // pred_check
      _
    $region27: #{tpu_custom_call.1} parent=1 // pred_check_branch
      %26 = sbr.rel (0) target = $region29
    $region28: #{tpu_custom_call.1} parent=1 // pred_region
      _
    $region29: #{tpu_custom_call.1} parent=1 // pred_fallthru
      _
    %v27 = vld [vmem:[%s0] sm:$0xff]
    %v28 = vld [vmem:[%s0 + $0x8] sm:$0xff]
    %v29 = vld [vmem:[%s5] sm:$0x1]
    %v30 = vld [vmem:[%s6] sm:$0x1]
    %v31 = vld [vmem:[%s1] sm:$0xff]
    %v32 = vld [vmem:[%s1 + $0x8] sm:$0xff]
    %v33 = vld [vmem:[%s1 + $0x10] sm:$0xff]
    %v34 = vld [vmem:[%s1 + $0x18] sm:$0xff]
    %v35 = vld [vmem:[%s2] sm:$0x1]
    %v37 = vlaneseq
    %v38 = vshrl.u32 %v37, 7
    %v39 = vsub.s32 0, %v38
    %v40 = vrot.slane %v35, %v39
    %vm42 = vcmask 261120
    %v44 = vsel %vm42, %v27, 0
    %v47 = vsel %vm42, %v28, 0
    %49 = vmatprep.subr.mxu0 0.0
    %50 = vmatpush1.msra.mxu0 %v31
    %51 = vmatprep.subr.mxu0 0.0
    %52 = vmatpush1.msra.mxu0 %v32
    %53 = vmatprep.subr.mxu0 0.0
    %54 = vmatpush1.msra.mxu0 %v33
    %55 = vmatprep.subr.mxu0 0.0
    %56 = vmatpush1.msra.mxu0 %v34
    %57 = vmatprep.subr.mxu0 0.0
    %58 = vmatpush1.msra.mxu0 0.0
    %59 = vmatprep.subr.mxu0 0.0
    %60 = vmatpush1.msra.mxu0 0.0
    %61 = vmatprep.subr.mxu0 0.0
    %62 = vmatpush1.msra.mxu0 0.0
    %63 = vmatprep.subr.mxu0 0.0
    %64 = vmatpush1.msra.mxu0 0.0
    %65 = vmatprep.subr.mxu0 0.0
    %66 = vmatpush1.msra.mxu0 0.0
    %67 = vmatprep.subr.mxu0 0.0
    %68 = vmatpush1.msra.mxu0 0.0
    %69 = vmatprep.subr.mxu0 0.0
    %70 = vmatpush1.msra.mxu0 0.0
    %71 = vmatprep.subr.mxu0 0.0
    %72 = vmatpush1.msra.mxu0 0.0
    %73 = vmatprep.subr.mxu0 0.0
    %74 = vmatpush1.msra.mxu0 0.0
    %75 = vmatprep.subr.mxu0 0.0
    %76 = vmatpush1.msra.mxu0 0.0
    %77 = vmatprep.subr.mxu0 0.0
    %78 = vmatpush1.msra.mxu0 0.0
    %79 = vmatprep.subr.mxu0 0.0
    %80 = vmatpush1.msra.mxu0 0.0
    %81 = vmatprep.subr.mxu0 0.0
    %82 = vmatpush1.msra.mxu0 0.0
    %83 = vmatprep.subr.mxu0 0.0
    %84 = vmatpush1.msra.mxu0 0.0
    %85 = vmatprep.subr.mxu0 0.0
    %86 = vmatpush1.msra.mxu0 0.0
    %87 = vmatprep.subr.mxu0 0.0
    %88 = vmatpush1.msra.mxu0 0.0
    %89 = vmatprep.subr.mxu0 0.0
    %90 = vmatpush1.msra.mxu0 0.0
    %91 = vmatprep.subr.mxu0 0.0
    %92 = vmatpush1.msra.mxu0 0.0
    %93 = vmatprep.subr.mxu0 0.0
    %94 = vmatpush1.msra.mxu0 0.0
    %95 = vmatprep.subr.mxu0 0.0
    %96 = vmatpush1.msra.mxu0 0.0
    %97 = vmatprep.subr.mxu0 0.0
    %98 = vmatpush1.msra.mxu0 0.0
    %99 = vmatprep.subr.mxu0 0.0
    %100 = vmatpush1.msra.mxu0 0.0
    %101 = vmatprep.subr.mxu0 0.0
    %102 = vmatpush1.msra.mxu0 0.0
    %103 = vmatprep.subr.mxu0 0.0
    %104 = vmatpush1.msra.mxu0 0.0
    %105 = vmatprep.subr.mxu0 0.0
    %106 = vmatpush1.msra.mxu0 0.0
    %107 = vmatprep.subr.mxu0 0.0
    %108 = vmatpush1.msra.mxu0 0.0
    %109 = vmatprep.subr.mxu0 0.0
    %110 = vmatpush1.msra.mxu0 0.0
    %111 = vmatprep.subr.mxu0 0.0
    %112 = vmatpush1.msra.mxu0 0.0
    %113 = vmatprep.mubr.f32.mxu0 0.0
    %114 = vmatmul.mubr.f32.gmra.mrb[0].mxu0 %v44
    %v115 = vpop.f32.mrb[0].mxu0
    %v116 = vadd.f32 %v40, %v115
    %v117 = vpop.f32.mrb[0].mxu0
    %118 = vmatprep.mubr.f32.mxu0 0.0
    %119 = vmatmul.mubr.f32.gmra.mrb[0].mxu0 %v47
    %v120 = vpop.f32.mrb[0].mxu0
    %v121 = vadd.f32 %v40, %v120
    %v122 = vpop.f32.mrb[0].mxu0
    %123 = vdwg.mxu0
    %v124 = vmax.f32 %v116, 0.0
    %v125 = vmax.f32 %v121, 0.0
    %v126 = vld [vmem:[%s3] sm:$0xff]
    %v127 = vld [vmem:[%s3 + $0x8] sm:$0xff]
    %v128 = vld [vmem:[%s3 + $0x10] sm:$0xff]
    %v129 = vld [vmem:[%s3 + $0x18] sm:$0xff]
    %v130 = vld [vmem:[%s3 + $0x20] sm:$0xff]
    %v131 = vld [vmem:[%s3 + $0x28] sm:$0xff]
    %v132 = vld [vmem:[%s3 + $0x30] sm:$0xff]
    %v133 = vld [vmem:[%s3 + $0x38] sm:$0xff]
    %v134 = vld [vmem:[%s4] sm:$0x1]
    %v136 = vlaneseq
    %v137 = vshrl.u32 %v136, 7
    %v138 = vsub.s32 0, %v137
    %v139 = vrot.slane %v134, %v138
    %vm141 = vcmask 523264
    %v143 = vsel %vm141, %v124, 0
    %v146 = vsel %vm141, %v125, 0
    %148 = vmatprep.subr.mxu0 0.0
    %149 = vmatpush1.msra.mxu0 %v126
    %150 = vmatprep.subr.mxu0 0.0
    %151 = vmatpush1.msra.mxu0 %v127
    %152 = vmatprep.subr.mxu0 0.0
    %153 = vmatpush1.msra.mxu0 %v128
    %154 = vmatprep.subr.mxu0 0.0
    %155 = vmatpush1.msra.mxu0 %v129
    %156 = vmatprep.subr.mxu0 0.0
    %157 = vmatpush1.msra.mxu0 %v130
    %158 = vmatprep.subr.mxu0 0.0
    %159 = vmatpush1.msra.mxu0 %v131
    %160 = vmatprep.subr.mxu0 0.0
    %161 = vmatpush1.msra.mxu0 %v132
    %162 = vmatprep.subr.mxu0 0.0
    %163 = vmatpush1.msra.mxu0 %v133
    %164 = vmatprep.subr.mxu0 0.0
    %165 = vmatpush1.msra.mxu0 0.0
    %166 = vmatprep.subr.mxu0 0.0
    %167 = vmatpush1.msra.mxu0 0.0
    %168 = vmatprep.subr.mxu0 0.0
    %169 = vmatpush1.msra.mxu0 0.0
    %170 = vmatprep.subr.mxu0 0.0
    %171 = vmatpush1.msra.mxu0 0.0
    %172 = vmatprep.subr.mxu0 0.0
    %173 = vmatpush1.msra.mxu0 0.0
    %174 = vmatprep.subr.mxu0 0.0
    %175 = vmatpush1.msra.mxu0 0.0
    %176 = vmatprep.subr.mxu0 0.0
    %177 = vmatpush1.msra.mxu0 0.0
    %178 = vmatprep.subr.mxu0 0.0
    %179 = vmatpush1.msra.mxu0 0.0
    %180 = vmatprep.subr.mxu0 0.0
    %181 = vmatpush1.msra.mxu0 0.0
    %182 = vmatprep.subr.mxu0 0.0
    %183 = vmatpush1.msra.mxu0 0.0
    %184 = vmatprep.subr.mxu0 0.0
    %185 = vmatpush1.msra.mxu0 0.0
    %186 = vmatprep.subr.mxu0 0.0
    %187 = vmatpush1.msra.mxu0 0.0
    %188 = vmatprep.subr.mxu0 0.0
    %189 = vmatpush1.msra.mxu0 0.0
    %190 = vmatprep.subr.mxu0 0.0
    %191 = vmatpush1.msra.mxu0 0.0
    %192 = vmatprep.subr.mxu0 0.0
    %193 = vmatpush1.msra.mxu0 0.0
    %194 = vmatprep.subr.mxu0 0.0
    %195 = vmatpush1.msra.mxu0 0.0
    %196 = vmatprep.subr.mxu0 0.0
    %197 = vmatpush1.msra.mxu0 0.0
    %198 = vmatprep.subr.mxu0 0.0
    %199 = vmatpush1.msra.mxu0 0.0
    %200 = vmatprep.subr.mxu0 0.0
    %201 = vmatpush1.msra.mxu0 0.0
    %202 = vmatprep.subr.mxu0 0.0
    %203 = vmatpush1.msra.mxu0 0.0
    %204 = vmatprep.subr.mxu0 0.0
    %205 = vmatpush1.msra.mxu0 0.0
    %206 = vmatprep.subr.mxu0 0.0
    %207 = vmatpush1.msra.mxu0 0.0
    %208 = vmatprep.subr.mxu0 0.0
    %209 = vmatpush1.msra.mxu0 0.0
    %210 = vmatprep.subr.mxu0 0.0
    %211 = vmatpush1.msra.mxu0 0.0
    %212 = vmatprep.mubr.f32.mxu0 0.0
    %213 = vmatmul.mubr.f32.gmra.mrb[0].mxu0 %v143
    %v214 = vpop.f32.mrb[0].mxu0
    %v215 = vadd.f32 %v139, %v214
    %v216 = vpop.f32.mrb[0].mxu0
    %217 = vmatprep.mubr.f32.mxu0 0.0
    %218 = vmatmul.mubr.f32.gmra.mrb[0].mxu0 %v146
    %v219 = vpop.f32.mrb[0].mxu0
    %v220 = vadd.f32 %v139, %v219
    %v221 = vpop.f32.mrb[0].mxu0
    %222 = vdwg.mxu0
    %v223 = vadd.f32 %v27, %v215
    %v224 = vadd.f32 %v28, %v220
    %v225 = vsel %vm42, %v223, 0.0
    %226 = vadd.xlane.f32.xlu0 %v225
    %v227 = vpop.xlane.xlu0 %226
    %v228 = vsel %vm42, %v224, 0.0
    %229 = vadd.xlane.f32.xlu0 %v228
    %v230 = vpop.xlane.xlu0 %229
    %v231 = vrcp.pop 32.0
    %v232 = vmul.f32 %v227, %v231
    %v233 = vmul.f32 %v230, %v231
    %v234 = vsub.f32 %v223, %v232
    %v235 = vsub.f32 %v224, %v233
    %v236 = vmul.f32 %v234, %v234
    %v237 = vmul.f32 %v235, %v235
    %v238 = vsel %vm42, %v236, 0.0
    %239 = vadd.xlane.f32.xlu0 %v238
    %v240 = vpop.xlane.xlu0 %239
    %v241 = vsel %vm42, %v237, 0.0
    %242 = vadd.xlane.f32.xlu0 %v241
    %v243 = vpop.xlane.xlu0 %242
    %v244 = vmul.f32 %v240, %v231
    %v245 = vmul.f32 %v243, %v231
    %v246 = vadd.f32 %v244, 1e-05
    %v247 = vadd.f32 %v245, 1e-05
    %v248 = vrsqrt.pop %v246
    %v249 = vrsqrt.pop %v247
    %v250 = vmul.f32 %v234, %v248
    %v251 = vmul.f32 %v235, %v249
    %v253 = vlaneseq
    %v254 = vshrl.u32 %v253, 7
    %v255 = vsub.s32 0, %v254
    %v256 = vrot.slane %v29, %v255
    %v258 = vmul.f32 %v250, %v256
    %v259 = vmul.f32 %v251, %v256
    %v261 = vlaneseq
    %v262 = vshrl.u32 %v261, 7
    %v263 = vsub.s32 0, %v262
    %v264 = vrot.slane %v30, %v263
    %v266 = vadd.f32 %v258, %v264
    %v267 = vadd.f32 %v259, %v264
    %268 = vst.msk [vmem:[#allocation2] sm:$0xff] %vm42, %v266
    %269 = vst.msk [vmem:[#allocation2 + $0x8] sm:$0xff] %vm42, %v267
    // Predicated region
    $region30: #{tpu_custom_call.1} parent=1 // pred_check
      _
    $region31: #{tpu_custom_call.1} parent=1 // pred_check_branch
      %271 = sbr.rel (0) target = $region33
    $region32: #{tpu_custom_call.1} parent=1 // pred_region
      %s273 = ssub.s32 256, 256
      %274 = vsyncadd [#allocation3], %s273
      %s275 = sshll.u32 [#allocation2], 4
      %s276 = int_to_ptr.vmem [resolvable:$true] %s275
      %281 = dma.vmem_to_hbm [thread:$0]  %s276, 256, %s7, [#allocation3], 128, 128, 8
    $region33: #{tpu_custom_call.1} parent=1 // pred_fallthru
      _
    // Predicated region
    $region34: #{tpu_custom_call.1} parent=1 // pred_check
      _
    $region35: #{tpu_custom_call.1} parent=1 // pred_check_branch
      %283 = sbr.rel (0) target = $region37
    $region36: #{tpu_custom_call.1} parent=1 // pred_region
      %284 = dma.done [#allocation3], 256
    $region37: #{tpu_custom_call.1} parent=1 // pred_fallthru
      _
    %285 = vsyncpa [#allocation3], 1

</llo_original>
